<compile_context>
chip_gen: v5e
topology: v5e:2x2
jax: 0.10.0
libtpu: 0.0.40
codegen_flags: <defaults>
</compile_context>

<pallas_src>
import jax
import jax.numpy as jnp
from jax.experimental import pallas as pl
from jax.experimental.pallas import tpu as pltpu


def _drop_kernel(x_ref, mask_ref, o_ref):
    # x_ref / o_ref: (BLOCK_ROWS, BLOCK_COLS) tiles in VMEM.
    # mask_ref:      (BLOCK_ROWS, 1) per-(n, c) scalar mask (broadcasts across
    #                lanes) in the channel-mask fast path, or
    #                (BLOCK_ROWS, BLOCK_COLS) in the general fallback path.
    o_ref[...] = x_ref[...] * mask_ref[...]


def _choose_block(rows, cols, itemsize, target_bytes=2 << 20):
    """Pick (block_rows, block_cols) ~= target_bytes, (8, 128)-legal."""
    # Prefer full-width (lane-dense) blocks whenever 8 rows of the full width
    # still fit the target; only tile columns for very large spatial planes.
    if cols * itemsize * 8 <= target_bytes or cols <= 128:
        block_cols = cols
    else:
        block_cols = (target_bytes // (8 * itemsize) // 128) * 128
        block_cols = max(128, min(block_cols, cols))

    block_rows = target_bytes // max(1, block_cols * itemsize)
    block_rows = max(8, (block_rows // 8) * 8)
    if block_rows >= rows:
        block_rows = rows  # full extent: always satisfies the (8,128) rule
    return block_rows, block_cols


def drop_forward(x, mask):
    """x: (N, C, H, W); mask: broadcastable to x (e.g. (1, C, 1, 1))."""
    N, C, H, W = x.shape
    rows, cols = N * C, H * W

    x2d = x.reshape(rows, cols)
    mask = jnp.asarray(mask, dtype=x.dtype)

    if mask.ndim == 4 and mask.shape[2] == 1 and mask.shape[3] == 1:
        # defective_resnet case: spatially-constant per-channel mask.
        # One scalar per (n, c) row -> (rows, 1); broadcast happens in-kernel.
        m2d = jnp.broadcast_to(mask, (N, C, 1, 1)).reshape(rows, 1)
        per_row_scalar = True
    else:
        # General fallback: arbitrary broadcastable mask, passed full-width.
        m2d = jnp.broadcast_to(mask, x.shape).reshape(rows, cols)
        per_row_scalar = False

    block_rows, block_cols = _choose_block(rows, cols, x.dtype.itemsize)
    grid = (pl.cdiv(rows, block_rows), pl.cdiv(cols, block_cols))

    if per_row_scalar:
        mask_spec = pl.BlockSpec((block_rows, 1), lambda i, j: (i, 0))
    else:
        mask_spec = pl.BlockSpec((block_rows, block_cols), lambda i, j: (i, j))

    itemsize = x.dtype.itemsize
    cost = pl.CostEstimate(
        flops=rows * cols,
        transcendentals=0,
        bytes_accessed=(2 * rows * cols + m2d.size) * itemsize,
    )

    out2d = pl.pallas_call(
        _drop_kernel,
        out_shape=jax.ShapeDtypeStruct((rows, cols), x.dtype),
        grid=grid,
        in_specs=[
            pl.BlockSpec((block_rows, block_cols), lambda i, j: (i, j)),
            mask_spec,
        ],
        out_specs=pl.BlockSpec((block_rows, block_cols), lambda i, j: (i, j)),
        compiler_params=pltpu.CompilerParams(
            dimension_semantics=("parallel", "parallel"),
            vmem_limit_bytes=32 << 20,
        ),
        cost_estimate=cost,
    )(x2d, m2d)

    return out2d.reshape(N, C, H, W)


if __name__ == "__main__":
    key = jax.random.PRNGKey(0)
    kx, _ = jax.random.split(key)

    N, C, H, W = 2, 4, 16, 16
    x = jax.random.normal(kx, (N, C, H, W), dtype=jnp.float32)

    # Deterministic per-channel drop mask (as used in defective_resnet):
    # drop channels 1 and 3, keep channels 0 and 2.
    mask = jnp.array([1.0, 0.0, 1.0, 0.0], dtype=jnp.float32).reshape(1, C, 1, 1)

    out = drop_forward(x, mask)
    out = jax.block_until_ready(out)

    # Reference check against plain broadcasting multiply.
    ref = x * mask
    assert out.shape == x.shape
    assert jnp.allclose(out, ref), "mismatch vs reference"

    print("KERNEL_OK")
</pallas_src>

<mosaic_0001>
module attributes {stable_mosaic.version = 11 : i64} {
  func.func @_drop_kernel(%arg0: i32, %arg1: i32, %arg2: memref<8x256xf32, #tpu.memory_space<vmem>>, %arg3: memref<8x1xf32, #tpu.memory_space<vmem>>, %arg4: memref<8x256xf32, #tpu.memory_space<vmem>>) attributes {dimension_semantics = [#tpu.dimension_semantics<parallel>, #tpu.dimension_semantics<parallel>], iteration_bounds = array<i64: 1, 1>, scalar_prefetch = 0 : i64, scratch_operands = 0 : i64, tpu.core_type = #tpu.core_type<tc>, window_params = [{transform_indices = @transform_0, window_bounds = array<i64: 8, 256>}, {transform_indices = @transform_1, window_bounds = array<i64: 8, 1>}, {transform_indices = @transform_2, window_bounds = array<i64: 8, 256>}]} {
    %c0 = arith.constant 0 : index
    %c0_0 = arith.constant 0 : index
    %0 = vector.load %arg2[%c0, %c0_0] : memref<8x256xf32, #tpu.memory_space<vmem>>, vector<8x256xf32>
    %c0_1 = arith.constant 0 : index
    %c0_2 = arith.constant 0 : index
    %1 = vector.load %arg3[%c0_1, %c0_2] : memref<8x1xf32, #tpu.memory_space<vmem>>, vector<8x1xf32>
    %2 = vector.broadcast %1 : vector<8x1xf32> to vector<8x256xf32>
    %3 = arith.mulf %0, %2 : vector<8x256xf32>
    %c0_3 = arith.constant 0 : index
    %c0_4 = arith.constant 0 : index
    %4 = vector.load %arg4[%c0_3, %c0_4] : memref<8x256xf32, #tpu.memory_space<vmem>>, vector<8x256xf32>
    tpu.vector_store %arg4[%c0_3, %c0_4], %3 {strides = array<i32>} : memref<8x256xf32, #tpu.memory_space<vmem>>, vector<8x256xf32>,
    return
  }
  func.func @transform_0(%arg0: i32, %arg1: i32) -> (i32, i32) {
    %c0_i32 = arith.constant 0 : i32
    return %arg0, %arg1 : i32, i32
  }
  func.func @transform_1(%arg0: i32, %arg1: i32) -> (i32, i32) {
    %c0_i32 = arith.constant 0 : i32
    %c0_i32_0 = arith.constant 0 : i32
    return %arg0, %c0_i32 : i32, i32
  }
  func.func @transform_2(%arg0: i32, %arg1: i32) -> (i32, i32) {
    %c0_i32 = arith.constant 0 : i32
    return %arg0, %arg1 : i32, i32
  }
}

</mosaic_0001>

<llo_original>
// kernel: tpu_custom_call.1
$region0: #{tpu_custom_call.1}
  #allocation0 [shape = 'u32[]', space=smem, size = 0x4, offset = 0x4, fixed_abs, tag = 'smem constant byte address 0x4 - core index']
  #allocation1 [shape = 'u32[72,128]{1,0:T(1,128)}', space=vmem, size = 0x9000, scoped, tag = 'internal scratch']
  %s0 = inlined_call_operand.hbm [shape: f32[8,256], index: 0, kind: input, shape index: {}]
  %s1 = inlined_call_operand.vmem [shape: f32[8,1], index: 1, kind: input, shape index: {}]
  %s2 = inlined_call_operand.hbm [shape: f32[8,256], index: 2, kind: output, shape index: {}]
  %s3 = sld [smem:[#allocation0]]
  $region22: #{tpu_custom_call.1} parent=0
    _
  %s5 = ssub.s32 1, %s3
  %s6 = scalar_select 0, %s5, %s3
  $region1: #{tpu_custom_call.1} parent=0
    #allocation2 [shape = 'u8[8192]{0}', space=vmem, size = 0x2000, scoped, tag = 'input window, operand 0, single buffered']
    #allocation3 [shape = 's32[1]{0}', space=sflag, size = 0x4, scoped, tag = 'scoped memory for tpu_custom_call.1']
    #allocation4 [shape = 's32[1]{0}', space=sflag, size = 0x4, scoped, tag = 'scoped memory for tpu_custom_call.1']
    #allocation5 [shape = 'u8[8192]{0}', space=vmem, size = 0x2000, scoped, tag = 'output window, operand 0, single buffered']
    %7 = vsyncpa [#allocation3], 0
    %8 = vsyncpa [#allocation4], 0
    // Predicated region
    $region2: #{tpu_custom_call.1} parent=1 // pred_check
      _
    $region3: #{tpu_custom_call.1} parent=1 // pred_check_branch
      %10 = sbr.rel (0) target = $region5
    $region4: #{tpu_custom_call.1} parent=1 // pred_region
      %12 = vsyncadd [#allocation3], 0
      %s14 = sshll.u32 %s0, 4
      %s15 = int_to_ptr.hbm [resolvable:$true] %s14
      %s16 = sshll.u32 [#allocation2], 4
      %s17 = int_to_ptr.vmem [resolvable:$true] %s16
      %19 = dma.hbm_to_vmem [thread:$0]  %s15, 256, %s17, [#allocation3]
    $region5: #{tpu_custom_call.1} parent=1 // pred_fallthru
      _
    // Predicated region
    $region6: #{tpu_custom_call.1} parent=1 // pred_check
      _
    $region7: #{tpu_custom_call.1} parent=1 // pred_check_branch
      %21 = sbr.rel (0) target = $region9
    $region8: #{tpu_custom_call.1} parent=1 // pred_region
      _
    $region9: #{tpu_custom_call.1} parent=1 // pred_fallthru
      _
    // Predicated region
    $region10: #{tpu_custom_call.1} parent=1 // pred_check
      _
    $region11: #{tpu_custom_call.1} parent=1 // pred_check_branch
      %23 = sbr.rel (0) target = $region13
    $region12: #{tpu_custom_call.1} parent=1 // pred_region
      %25 = dma.done [#allocation3], 256
    $region13: #{tpu_custom_call.1} parent=1 // pred_fallthru
      _
    %v26 = vld [vmem:[#allocation2] sm:$0xff]
    %v27 = vld [vmem:[#allocation2 + $0x8] sm:$0xff]
    %v28 = vld [vmem:[%s1] sm:$0xff]
    %30 = vset.pattern.permute.xlu0 0
    %31 = vperm.xlu0 %30, %v28
    %v32 = vpop.permute.xlu0 %31
    %v34 = vmul.f32 %v26, %v32
    %v35 = vmul.f32 %v27, %v32
    %36 = vst [vmem:[#allocation5] sm:$0xff] %v34
    %37 = vst [vmem:[#allocation5 + $0x8] sm:$0xff] %v35
    // Predicated region
    $region14: #{tpu_custom_call.1} parent=1 // pred_check
      _
    $region15: #{tpu_custom_call.1} parent=1 // pred_check_branch
      %39 = sbr.rel (0) target = $region17
    $region16: #{tpu_custom_call.1} parent=1 // pred_region
      %41 = vsyncadd [#allocation4], 0
      %s43 = sshll.u32 [#allocation5], 4
      %s44 = int_to_ptr.vmem [resolvable:$true] %s43
      %s45 = sshll.u32 %s2, 4
      %s46 = int_to_ptr.hbm [resolvable:$true] %s45
      %48 = dma.vmem_to_hbm [thread:$0]  %s44, 256, %s46, [#allocation4]
    $region17: #{tpu_custom_call.1} parent=1 // pred_fallthru
      _
    // Predicated region
    $region18: #{tpu_custom_call.1} parent=1 // pred_check
      _
    $region19: #{tpu_custom_call.1} parent=1 // pred_check_branch
      %50 = sbr.rel (0) target = $region21
    $region20: #{tpu_custom_call.1} parent=1 // pred_region
      %52 = dma.done [#allocation4], 256
    $region21: #{tpu_custom_call.1} parent=1 // pred_fallthru
      _
    %53 = vsyncpa [#allocation3], 1
    %54 = vsyncpa [#allocation4], 1

</llo_original>
